<compile_context>
chip_gen: v7x
topology: tpu7x:2x2x1
jax: 0.10.0
libtpu: 0.0.40
codegen_flags: <defaults>
</compile_context>

<pallas_src>
import functools

import jax
import jax.numpy as jnp
from jax.experimental import pallas as pl
from jax.experimental.pallas import tpu as pltpu


# ---------------------------------------------------------------------------
# Kernel body
# ---------------------------------------------------------------------------
def _relation_head_kernel(code_ref, text_ref, wd_ref, bd_ref, wo_ref, bo_ref,
                          out_ref, sum_code_ref, sum_text_ref,
                          *, inv_s, hidden, seq_tile, seq_len):
    k = pl.program_id(1)

    @pl.when(k == 0)
    def _init():
        sum_code_ref[...] = jnp.zeros_like(sum_code_ref)
        sum_text_ref[...] = jnp.zeros_like(sum_text_ref)

    # Upcast to f32 before accumulating (required for bf16 streams on v5e).
    code = code_ref[...].astype(jnp.float32)          # (Bb, Ts, H)
    text = text_ref[...].astype(jnp.float32)          # (Bb, Ts, H)

    # Mask the ragged tail tile (only emitted when S % Ts != 0).
    if seq_len % seq_tile != 0:
        remaining = seq_len - k * seq_tile
        tok = jax.lax.broadcasted_iota(jnp.int32, (1, seq_tile, 1), 1)
        valid = tok < remaining
        code = jnp.where(valid, code, 0.0)
        text = jnp.where(valid, text, 0.0)

    bb = code.shape[0]
    H = hidden
    if seq_tile % 8 == 0:
        # Sublane-aligned partial sums: pure VPU adds in the inner loop,
        # cross-sublane collapse deferred to _finalize.
        sum_code_ref[...] += jnp.sum(
            code.reshape(bb, seq_tile // 8, 8, H), axis=1)
        sum_text_ref[...] += jnp.sum(
            text.reshape(bb, seq_tile // 8, 8, H), axis=1)
    else:
        # Only reachable when Ts == S and S is not a multiple of 8.
        sum_code_ref[:, 0:1, :] += jnp.sum(code, axis=1, keepdims=True)
        sum_text_ref[:, 0:1, :] += jnp.sum(text, axis=1, keepdims=True)

    @pl.when(k == pl.num_programs(1) - 1)
    def _finalize():
        pool_code = jnp.sum(sum_code_ref[...], axis=1) * inv_s   # (Bb, H)
        pool_text = jnp.sum(sum_text_ref[...], axis=1) * inv_s   # (Bb, H)
        diff = jnp.abs(pool_code - pool_text)                    # (Bb, H)

        # dense(cat([pool_code, pool_text, diff], -1)) ==
        #   pool_code @ Wd[:H] + pool_text @ Wd[H:2H] + diff @ Wd[2H:] + bd
        h = (jnp.dot(pool_code, wd_ref[0:H, :],
                     preferred_element_type=jnp.float32)
             + jnp.dot(pool_text, wd_ref[H:2 * H, :],
                       preferred_element_type=jnp.float32)
             + jnp.dot(diff, wd_ref[2 * H:3 * H, :],
                       preferred_element_type=jnp.float32)
             + bd_ref[...])                                       # (Bb, H)
        h = jnp.tanh(h)

        logits = (jnp.dot(h, wo_ref[...], preferred_element_type=jnp.float32)
                  + bo_ref[...])                                  # (Bb, 2)
        out_ref[...] = logits.astype(out_ref.dtype)


# ---------------------------------------------------------------------------
# Tiling / VMEM planning helpers
# ---------------------------------------------------------------------------
def _padded_bytes(shape, itemsize):
    """Approximate VMEM footprint of an array, padded to (8, 128) tiles."""
    if len(shape) == 1:
        lead, r, c = 1, 1, shape[0]
    else:
        lead = 1
        for d in shape[:-2]:
            lead *= d
        r, c = shape[-2], shape[-1]
    r_pad = -(-r // 8) * 8
    c_pad = -(-c // 128) * 128
    return lead * r_pad * c_pad * itemsize


def _vmem_capacity_bytes():
    """Generation-aware VMEM capacity (128 MiB v5e/v6e, 64 MiB v7x per core)."""
    try:
        info = pltpu.get_tpu_info()
        cap = getattr(info, "vmem_capacity_bytes", None)
        if cap:
            return int(cap)
    except Exception:
        pass
    return 64 << 20  # conservative fallback (v7x per-TensorCore VMEM)


def _pick_batch_tile(B, force=None):
    """Prefer >=2 batch tiles with Bb % 8 == 0 so v7x's second TC gets work."""
    if force is not None:
        return force
    if B % 8 != 0:
        return B
    cands = [bb for bb in range(8, B, 8) if B % bb == 0]
    even = [bb for bb in cands if (B // bb) % 2 == 0]
    if even:
        return max(even)
    if cands:
        return max(cands)
    return B


def _choose_seq_tile(S, Bb, H, act_itemsize, weight_bytes, scratch_bytes,
                     vmem_budget, max_stream_block_bytes, force=None):
    """Largest Ts whose double-buffered streams fit next to weights+scratch."""
    align = 16 if act_itemsize == 2 else 8   # bf16 blocks need sublane dim %16
    if force is not None:
        ts = min(int(force), S)
        if ts >= S:
            return S
        ts = max(align, (ts // align) * align)
        return S if ts >= S else ts

    h_pad = -(-H // 128) * 128
    avail = max(0, vmem_budget - weight_bytes - scratch_bytes - (2 << 20))
    per_token = 2 * 2 * Bb * h_pad * act_itemsize      # 2 streams x 2 buffers
    ts_vmem = max(align, avail // max(1, per_token))
    ts_target = max(align,
                    max_stream_block_bytes // max(1, Bb * h_pad * act_itemsize))
    ts = min(ts_vmem, ts_target)
    if ts >= S:
        return S
    return max(align, (ts // align) * align)


# ---------------------------------------------------------------------------
# pallas_call builder + public wrapper
# ---------------------------------------------------------------------------
def _build_pallas_call(B, S, H, act_dtype, Bb, Ts, vmem_limit,
                       single_buffer_weights):
    kernel = functools.partial(_relation_head_kernel, inv_s=1.0 / S,
                               hidden=H, seq_tile=Ts, seq_len=S)
    grid = (B // Bb, pl.cdiv(S, Ts))

    w_kwargs = {}
    if single_buffer_weights:
        # Constant index_maps -> weights never change; double-buffering them is
        # pure VMEM waste (matters most under v7x's 64 MiB).
        w_kwargs = dict(pipeline_mode=pl.Buffered(1))

    itemsize = jnp.dtype(act_dtype).itemsize
    bytes_accessed = (2 * B * S * H * itemsize            # activation streams
                      + (3 * H * H + 3 * H + 2) * 4       # weights / biases
                      + B * 2 * 4)                        # output
    flops = 2 * B * S * H + 2 * B * (3 * H) * H + 2 * B * H * 2

    return pl.pallas_call(
        kernel,
        out_shape=jax.ShapeDtypeStruct((B, 2), jnp.float32),
        grid_spec=pltpu.PrefetchScalarGridSpec(
            num_scalar_prefetch=0,
            grid=grid,
            in_specs=[
                pl.BlockSpec((Bb, Ts, H), lambda b, k: (b, k, 0)),   # code
                pl.BlockSpec((Bb, Ts, H), lambda b, k: (b, k, 0)),   # text
                pl.BlockSpec((3 * H, H), lambda b, k: (0, 0), **w_kwargs),
                pl.BlockSpec((1, H), lambda b, k: (0, 0), **w_kwargs),
                pl.BlockSpec((H, 2), lambda b, k: (0, 0), **w_kwargs),
                pl.BlockSpec((1, 2), lambda b, k: (0, 0), **w_kwargs),
            ],
            out_specs=pl.BlockSpec((Bb, 2), lambda b, k: (b, 0)),
            scratch_shapes=[
                pltpu.VMEM((Bb, 8, H), jnp.float32),   # running code sums
                pltpu.VMEM((Bb, 8, H), jnp.float32),   # running text sums
            ],
        ),
        compiler_params=pltpu.CompilerParams(
            dimension_semantics=("parallel", "arbitrary"),
            vmem_limit_bytes=int(vmem_limit),
        ),
        cost_estimate=pl.CostEstimate(
            flops=flops, transcendentals=B * H, bytes_accessed=bytes_accessed),
    )


def relation_classify_header(code_hidden, text_hidden, params, *,
                             max_stream_block_bytes=16 << 20,
                             seq_tile=None, batch_tile=None):
    """code_hidden, text_hidden: (B, S, H) f32 or bf16. Returns (B, 2) f32."""
    B, S, H = code_hidden.shape
    assert text_hidden.shape == (B, S, H)
    assert text_hidden.dtype == code_hidden.dtype
    act_dtype = code_hidden.dtype

    wd = params["dense_w"].astype(jnp.float32)            # (3H, H)
    bd = params["dense_b"].astype(jnp.float32).reshape(1, H)
    wo = params["out_w"].astype(jnp.float32)               # (H, 2)
    bo = params["out_b"].astype(jnp.float32).reshape(1, 2)

    itemsize = jnp.dtype(act_dtype).itemsize
    Bb = _pick_batch_tile(B, batch_tile)
    vmem_budget = _vmem_capacity_bytes() * 3 // 4           # ~96 MiB / ~48 MiB

    def plan_ts(single_buffer_weights):
        bufs = 1 if single_buffer_weights else 2
        weight_bytes = bufs * (_padded_bytes((3 * H, H), 4)
                               + _padded_bytes((1, H), 4)
                               + _padded_bytes((H, 2), 4)
                               + _padded_bytes((1, 2), 4))
        scratch_bytes = 2 * _padded_bytes((Bb, 8, H), 4)
        return _choose_seq_tile(S, Bb, H, itemsize, weight_bytes, scratch_bytes,
                                vmem_budget, max_stream_block_bytes,
                                force=seq_tile)

    args = (code_hidden, text_hidden, wd, bd, wo, bo)
    try:
        Ts = plan_ts(True)
        call = _build_pallas_call(B, S, H, act_dtype, Bb, Ts, vmem_budget, True)
        return call(*args)
    except Exception:
        # Fallback for jax versions without BlockSpec pipeline_mode support.
        Ts = plan_ts(False)
        call = _build_pallas_call(B, S, H, act_dtype, Bb, Ts, vmem_budget, False)
        return call(*args)


# ---------------------------------------------------------------------------
# Pure-JAX reference + tests
# ---------------------------------------------------------------------------
def _reference(code_hidden, text_hidden, params):
    pc = jnp.mean(code_hidden.astype(jnp.float32), axis=1)
    pt = jnp.mean(text_hidden.astype(jnp.float32), axis=1)
    diff = jnp.abs(pc - pt)
    x = jnp.concatenate([pc, pt, diff], axis=1)
    x = jnp.tanh(x @ params["dense_w"] + params["dense_b"])
    return x @ params["out_w"] + params["out_b"]


def _make_params(key, H):
    k1, k2, k3, k4 = jax.random.split(key, 4)
    return {
        "dense_w": jax.random.normal(k1, (3 * H, H), dtype=jnp.float32) * 0.05,
        "dense_b": jax.random.normal(k2, (1, H), dtype=jnp.float32) * 0.05,
        "out_w":   jax.random.normal(k3, (H, 2), dtype=jnp.float32) * 0.05,
        "out_b":   jax.random.normal(k4, (1, 2), dtype=jnp.float32) * 0.05,
    }


if __name__ == "__main__":
    key = jax.random.PRNGKey(0)

    # ---- Test 1: small shape consistent with the module (single-tile path).
    B, S, H = 2, 8, 32
    k1, k2, kp, key = jax.random.split(key, 4)
    code = jax.random.normal(k1, (B, S, H), dtype=jnp.float32)
    text = jax.random.normal(k2, (B, S, H), dtype=jnp.float32)
    params = _make_params(kp, H)

    out = jax.block_until_ready(relation_classify_header(code, text, params))
    ref = _reference(code, text, params)
    assert out.shape == (B, 2)
    assert jnp.allclose(out, ref, atol=1e-5, rtol=1e-5), "test1 mismatch"

    # ---- Test 2: multi-step path — >=2 batch tiles, >=2 seq tiles, ragged S.
    B2, S2, H2 = 16, 40, 128
    k1, k2, kp, key = jax.random.split(key, 4)
    code2 = jax.random.normal(k1, (B2, S2, H2), dtype=jnp.float32)
    text2 = jax.random.normal(k2, (B2, S2, H2), dtype=jnp.float32)
    params2 = _make_params(kp, H2)

    out2 = jax.block_until_ready(
        relation_classify_header(code2, text2, params2, seq_tile=16))
    ref2 = _reference(code2, text2, params2)
    assert out2.shape == (B2, 2)
    assert jnp.allclose(out2, ref2, atol=1e-4, rtol=1e-4), "test2 mismatch"

    # ---- Test 3: bf16 activation streaming (halves HBM bytes), f32 accum.
    code3 = code2.astype(jnp.bfloat16)
    text3 = text2.astype(jnp.bfloat16)
    out3 = jax.block_until_ready(
        relation_classify_header(code3, text3, params2, seq_tile=16))
    ref3 = _reference(code3, text3, params2)
    assert out3.shape == (B2, 2)
    assert jnp.allclose(out3, ref3, atol=1e-3, rtol=1e-3), "test3 mismatch"

    print("KERNEL_OK")
</pallas_src>

<mosaic_0001>
module attributes {stable_mosaic.version = 11 : i64} {
  func.func @_relation_head_kernel(%arg0: i32, %arg1: i32, %arg2: memref<2x8x32xf32, #tpu.memory_space<vmem>>, %arg3: memref<2x8x32xf32, #tpu.memory_space<vmem>>, %arg4: memref<96x32xf32, #tpu.memory_space<vmem>>, %arg5: memref<1x32xf32, #tpu.memory_space<vmem>>, %arg6: memref<32x2xf32, #tpu.memory_space<vmem>>, %arg7: memref<1x2xf32, #tpu.memory_space<vmem>>, %arg8: memref<2x2xf32, #tpu.memory_space<vmem>>, %arg9: memref<2x8x32xf32, #tpu.memory_space<vmem>>, %arg10: memref<2x8x32xf32, #tpu.memory_space<vmem>>) attributes {dimension_semantics = [#tpu.dimension_semantics<parallel>, #tpu.dimension_semantics<arbitrary>], iteration_bounds = array<i64: 1, 1>, scalar_prefetch = 0 : i64, scratch_operands = 2 : i64, tpu.core_type = #tpu.core_type<tc>, window_params = [{transform_indices = @transform_0, window_bounds = array<i64: 2, 8, 32>}, {transform_indices = @transform_1, window_bounds = array<i64: 2, 8, 32>}, {pipeline_mode = #tpu.pipeline_mode<synchronous>, transform_indices = @transform_2, window_bounds = array<i64: 96, 32>}, {pipeline_mode = #tpu.pipeline_mode<synchronous>, transform_indices = @transform_3, window_bounds = array<i64: 1, 32>}, {pipeline_mode = #tpu.pipeline_mode<synchronous>, transform_indices = @transform_4, window_bounds = array<i64: 32, 2>}, {pipeline_mode = #tpu.pipeline_mode<synchronous>, transform_indices = @transform_5, window_bounds = array<i64: 1, 2>}, {transform_indices = @transform_6, window_bounds = array<i64: 2, 2>}]} {
    %c0_i32 = arith.constant 0 : i32
    %0 = arith.cmpi eq, %arg1, %c0_i32 : i32
    %1 = arith.extui %0 : i1 to i32
    %c0_i32_0 = arith.constant 0 : i32
    %2 = arith.cmpi ne, %1, %c0_i32_0 : i32
    scf.if %2 {
      %cst_21 = arith.constant 0.000000e+00 : f32
      %18 = vector.broadcast %cst_21 : f32 to vector<2x8x32xf32>
      %c0_22 = arith.constant 0 : index
      %c0_23 = arith.constant 0 : index
      %c0_24 = arith.constant 0 : index
      %19 = vector.load %arg9[%c0_22, %c0_23, %c0_24] : memref<2x8x32xf32, #tpu.memory_space<vmem>>, vector<2x8x32xf32>
      tpu.vector_store %arg9[%c0_22, %c0_23, %c0_24], %18 {strides = array<i32>} : memref<2x8x32xf32, #tpu.memory_space<vmem>>, vector<2x8x32xf32>,
      %cst_25 = arith.constant 0.000000e+00 : f32
      %20 = vector.broadcast %cst_25 : f32 to vector<2x8x32xf32>
      %c0_26 = arith.constant 0 : index
      %c0_27 = arith.constant 0 : index
      %c0_28 = arith.constant 0 : index
      %21 = vector.load %arg10[%c0_26, %c0_27, %c0_28] : memref<2x8x32xf32, #tpu.memory_space<vmem>>, vector<2x8x32xf32>
      tpu.vector_store %arg10[%c0_26, %c0_27, %c0_28], %20 {strides = array<i32>} : memref<2x8x32xf32, #tpu.memory_space<vmem>>, vector<2x8x32xf32>,
    } else {
    }
    %c0 = arith.constant 0 : index
    %c0_1 = arith.constant 0 : index
    %c0_2 = arith.constant 0 : index
    %3 = vector.load %arg2[%c0, %c0_1, %c0_2] : memref<2x8x32xf32, #tpu.memory_space<vmem>>, vector<2x8x32xf32>
    %c0_3 = arith.constant 0 : index
    %c0_4 = arith.constant 0 : index
    %c0_5 = arith.constant 0 : index
    %4 = vector.load %arg3[%c0_3, %c0_4, %c0_5] : memref<2x8x32xf32, #tpu.memory_space<vmem>>, vector<2x8x32xf32>
    %c0_6 = arith.constant 0 : index
    %c0_7 = arith.constant 0 : index
    %c0_8 = arith.constant 0 : index
    %5 = vector.load %arg9[%c0_6, %c0_7, %c0_8] : memref<2x8x32xf32, #tpu.memory_space<vmem>>, vector<2x8x32xf32>
    %6 = vector.shape_cast %3 : vector<2x8x32xf32> to vector<2x1x8x32xf32>
    %cst = arith.constant dense<0.000000e+00> : vector<2x8x32xf32>
    %7 = vector.multi_reduction <add>, %6, %cst [1] : vector<2x1x8x32xf32> to vector<2x8x32xf32>
    %8 = arith.addf %5, %7 : vector<2x8x32xf32>
    %c0_9 = arith.constant 0 : index
    %c0_10 = arith.constant 0 : index
    %c0_11 = arith.constant 0 : index
    %9 = vector.load %arg9[%c0_9, %c0_10, %c0_11] : memref<2x8x32xf32, #tpu.memory_space<vmem>>, vector<2x8x32xf32>
    tpu.vector_store %arg9[%c0_9, %c0_10, %c0_11], %8 {strides = array<i32>} : memref<2x8x32xf32, #tpu.memory_space<vmem>>, vector<2x8x32xf32>,
    %c0_12 = arith.constant 0 : index
    %c0_13 = arith.constant 0 : index
    %c0_14 = arith.constant 0 : index
    %10 = vector.load %arg10[%c0_12, %c0_13, %c0_14] : memref<2x8x32xf32, #tpu.memory_space<vmem>>, vector<2x8x32xf32>
    %11 = vector.shape_cast %4 : vector<2x8x32xf32> to vector<2x1x8x32xf32>
    %cst_15 = arith.constant dense<0.000000e+00> : vector<2x8x32xf32>
    %12 = vector.multi_reduction <add>, %11, %cst_15 [1] : vector<2x1x8x32xf32> to vector<2x8x32xf32>
    %13 = arith.addf %10, %12 : vector<2x8x32xf32>
    %c0_16 = arith.constant 0 : index
    %c0_17 = arith.constant 0 : index
    %c0_18 = arith.constant 0 : index
    %14 = vector.load %arg10[%c0_16, %c0_17, %c0_18] : memref<2x8x32xf32, #tpu.memory_space<vmem>>, vector<2x8x32xf32>
    tpu.vector_store %arg10[%c0_16, %c0_17, %c0_18], %13 {strides = array<i32>} : memref<2x8x32xf32, #tpu.memory_space<vmem>>, vector<2x8x32xf32>,
    %c0_i32_19 = arith.constant 0 : i32
    %15 = arith.cmpi eq, %arg1, %c0_i32_19 : i32
    %16 = arith.extui %15 : i1 to i32
    %c0_i32_20 = arith.constant 0 : i32
    %17 = arith.cmpi ne, %16, %c0_i32_20 : i32
    scf.if %17 {
      %c0_21 = arith.constant 0 : index
      %c0_22 = arith.constant 0 : index
      %c0_23 = arith.constant 0 : index
      %18 = vector.load %arg9[%c0_21, %c0_22, %c0_23] : memref<2x8x32xf32, #tpu.memory_space<vmem>>, vector<2x8x32xf32>
      %cst_24 = arith.constant dense<0.000000e+00> : vector<2x32xf32>
      %19 = vector.multi_reduction <add>, %18, %cst_24 [1] : vector<2x8x32xf32> to vector<2x32xf32>
      %cst_25 = arith.constant 1.250000e-01 : f32
      %20 = vector.broadcast %cst_25 : f32 to vector<2x32xf32>
      %21 = arith.mulf %19, %20 : vector<2x32xf32>
      %c0_26 = arith.constant 0 : index
      %c0_27 = arith.constant 0 : index
      %c0_28 = arith.constant 0 : index
      %22 = vector.load %arg10[%c0_26, %c0_27, %c0_28] : memref<2x8x32xf32, #tpu.memory_space<vmem>>, vector<2x8x32xf32>
      %cst_29 = arith.constant dense<0.000000e+00> : vector<2x32xf32>
      %23 = vector.multi_reduction <add>, %22, %cst_29 [1] : vector<2x8x32xf32> to vector<2x32xf32>
      %cst_30 = arith.constant 1.250000e-01 : f32
      %24 = vector.broadcast %cst_30 : f32 to vector<2x32xf32>
      %25 = arith.mulf %23, %24 : vector<2x32xf32>
      %26 = arith.subf %21, %25 : vector<2x32xf32>
      %27 = math.absf %26 : vector<2x32xf32>
      %c0_31 = arith.constant 0 : index
      %c0_32 = arith.constant 0 : index
      %28 = vector.load %arg4[%c0_31, %c0_32] : memref<96x32xf32, #tpu.memory_space<vmem>>, vector<32x32xf32>
      %cst_33 = arith.constant dense<0.000000e+00> : vector<2x32xf32>
      %29 = tpu.matmul %21, %28, %cst_33 {dimension_numbers = #tpu.dot_dimension_numbers<[1], [0], [0], [1], [0, 0, 1, 1], [], []>} : vector<2x32xf32>, vector<32x32xf32>, vector<2x32xf32> -> vector<2x32xf32>
      %c32 = arith.constant 32 : index
      %c0_34 = arith.constant 0 : index
      %30 = vector.load %arg4[%c32, %c0_34] : memref<96x32xf32, #tpu.memory_space<vmem>>, vector<32x32xf32>
      %cst_35 = arith.constant dense<0.000000e+00> : vector<2x32xf32>
      %31 = tpu.matmul %25, %30, %cst_35 {dimension_numbers = #tpu.dot_dimension_numbers<[1], [0], [0], [1], [0, 0, 1, 1], [], []>} : vector<2x32xf32>, vector<32x32xf32>, vector<2x32xf32> -> vector<2x32xf32>
      %32 = arith.addf %29, %31 : vector<2x32xf32>
      %c64 = arith.constant 64 : index
      %c0_36 = arith.constant 0 : index
      %33 = vector.load %arg4[%c64, %c0_36] : memref<96x32xf32, #tpu.memory_space<vmem>>, vector<32x32xf32>
      %cst_37 = arith.constant dense<0.000000e+00> : vector<2x32xf32>
      %34 = tpu.matmul %27, %33, %cst_37 {dimension_numbers = #tpu.dot_dimension_numbers<[1], [0], [0], [1], [0, 0, 1, 1], [], []>} : vector<2x32xf32>, vector<32x32xf32>, vector<2x32xf32> -> vector<2x32xf32>
      %35 = arith.addf %32, %34 : vector<2x32xf32>
      %c0_38 = arith.constant 0 : index
      %c0_39 = arith.constant 0 : index
      %36 = vector.load %arg5[%c0_38, %c0_39] : memref<1x32xf32, #tpu.memory_space<vmem>>, vector<1x32xf32>
      %37 = vector.broadcast %36 : vector<1x32xf32> to vector<2x32xf32>
      %38 = arith.addf %35, %37 : vector<2x32xf32>
      %39 = math.tanh %38 : vector<2x32xf32>
      %c0_40 = arith.constant 0 : index
      %c0_41 = arith.constant 0 : index
      %40 = vector.load %arg6[%c0_40, %c0_41] : memref<32x2xf32, #tpu.memory_space<vmem>>, vector<32x2xf32>
      %cst_42 = arith.constant dense<0.000000e+00> : vector<2x2xf32>
      %41 = tpu.matmul %39, %40, %cst_42 {dimension_numbers = #tpu.dot_dimension_numbers<[1], [0], [0], [1], [0, 0, 1, 1], [], []>} : vector<2x32xf32>, vector<32x2xf32>, vector<2x2xf32> -> vector<2x2xf32>
      %c0_43 = arith.constant 0 : index
      %c0_44 = arith.constant 0 : index
      %42 = vector.load %arg7[%c0_43, %c0_44] : memref<1x2xf32, #tpu.memory_space<vmem>>, vector<1x2xf32>
      %43 = vector.broadcast %42 : vector<1x2xf32> to vector<2x2xf32>
      %44 = arith.addf %41, %43 : vector<2x2xf32>
      %c0_45 = arith.constant 0 : index
      %c0_46 = arith.constant 0 : index
      %45 = vector.load %arg8[%c0_45, %c0_46] : memref<2x2xf32, #tpu.memory_space<vmem>>, vector<2x2xf32>
      tpu.vector_store %arg8[%c0_45, %c0_46], %44 {strides = array<i32>} : memref<2x2xf32, #tpu.memory_space<vmem>>, vector<2x2xf32>,
    } else {
    }
    return
  }
  func.func @transform_0(%arg0: i32, %arg1: i32) -> (i32, i32, i32) {
    %c0_i32 = arith.constant 0 : i32
    %c0_i32_0 = arith.constant 0 : i32
    return %arg0, %arg1, %c0_i32 : i32, i32, i32
  }
  func.func @transform_1(%arg0: i32, %arg1: i32) -> (i32, i32, i32) {
    %c0_i32 = arith.constant 0 : i32
    %c0_i32_0 = arith.constant 0 : i32
    return %arg0, %arg1, %c0_i32 : i32, i32, i32
  }
  func.func @transform_2(%arg0: i32, %arg1: i32) -> (i32, i32) {
    %c0_i32 = arith.constant 0 : i32
    %c0_i32_0 = arith.constant 0 : i32
    %c0_i32_1 = arith.constant 0 : i32
    return %c0_i32, %c0_i32_0 : i32, i32
  }
  func.func @transform_3(%arg0: i32, %arg1: i32) -> (i32, i32) {
    %c0_i32 = arith.constant 0 : i32
    %c0_i32_0 = arith.constant 0 : i32
    %c0_i32_1 = arith.constant 0 : i32
    return %c0_i32, %c0_i32_0 : i32, i32
  }
  func.func @transform_4(%arg0: i32, %arg1: i32) -> (i32, i32) {
    %c0_i32 = arith.constant 0 : i32
    %c0_i32_0 = arith.constant 0 : i32
    %c0_i32_1 = arith.constant 0 : i32
    return %c0_i32, %c0_i32_0 : i32, i32
  }
  func.func @transform_5(%arg0: i32, %arg1: i32) -> (i32, i32) {
    %c0_i32 = arith.constant 0 : i32
    %c0_i32_0 = arith.constant 0 : i32
    %c0_i32_1 = arith.constant 0 : i32
    return %c0_i32, %c0_i32_0 : i32, i32
  }
  func.func @transform_6(%arg0: i32, %arg1: i32) -> (i32, i32) {
    %c0_i32 = arith.constant 0 : i32
    %c0_i32_0 = arith.constant 0 : i32
    return %arg0, %c0_i32 : i32, i32
  }
}

module attributes {stable_mosaic.version = 11 : i64} {
  func.func @_relation_head_kernel(%arg0: i32, %arg1: i32, %arg2: memref<2x8x32xf32, #tpu.memory_space<vmem>>, %arg3: memref<2x8x32xf32, #tpu.memory_space<vmem>>, %arg4: memref<96x32xf32, #tpu.memory_space<vmem>>, %arg5: memref<1x32xf32, #tpu.memory_space<vmem>>, %arg6: memref<32x2xf32, #tpu.memory_space<vmem>>, %arg7: memref<1x2xf32, #tpu.memory_space<vmem>>, %arg8: memref<2x2xf32, #tpu.memory_space<vmem>>, %arg9: memref<2x8x32xf32, #tpu.memory_space<vmem>>, %arg10: memref<2x8x32xf32, #tpu.memory_space<vmem>>) attributes {dimension_semantics = [#tpu.dimension_semantics<parallel>, #tpu.dimension_semantics<arbitrary>], iteration_bounds = array<i64: 1, 1>, scalar_prefetch = 0 : i64, scratch_operands = 2 : i64, tpu.core_type = #tpu.core_type<tc>, window_params = [{transform_indices = @transform_0, window_bounds = array<i64: 2, 8, 32>}, {transform_indices = @transform_1, window_bounds = array<i64: 2, 8, 32>}, {pipeline_mode = #tpu.pipeline_mode<synchronous>, transform_indices = @transform_2, window_bounds = array<i64: 96, 32>}, {pipeline_mode = #tpu.pipeline_mode<synchronous>, transform_indices = @transform_3, window_bounds = array<i64: 1, 32>}, {pipeline_mode = #tpu.pipeline_mode<synchronous>, transform_indices = @transform_4, window_bounds = array<i64: 32, 2>}, {pipeline_mode = #tpu.pipeline_mode<synchronous>, transform_indices = @transform_5, window_bounds = array<i64: 1, 2>}, {transform_indices = @transform_6, window_bounds = array<i64: 2, 2>}]} {
    %c0_i32 = arith.constant 0 : i32
    %0 = arith.cmpi eq, %arg1, %c0_i32 : i32
    %1 = arith.extui %0 : i1 to i32
    %c0_i32_0 = arith.constant 0 : i32
    %2 = arith.cmpi ne, %1, %c0_i32_0 : i32
    scf.if %2 {
      %cst_21 = arith.constant 0.000000e+00 : f32
      %18 = vector.broadcast %cst_21 : f32 to vector<2x8x32xf32>
      %c0_22 = arith.constant 0 : index
      %c0_23 = arith.constant 0 : index
      %c0_24 = arith.constant 0 : index
      %19 = vector.load %arg9[%c0_22, %c0_23, %c0_24] : memref<2x8x32xf32, #tpu.memory_space<vmem>>, vector<2x8x32xf32>
      tpu.vector_store %arg9[%c0_22, %c0_23, %c0_24], %18 {strides = array<i32>} : memref<2x8x32xf32, #tpu.memory_space<vmem>>, vector<2x8x32xf32>,
      %cst_25 = arith.constant 0.000000e+00 : f32
      %20 = vector.broadcast %cst_25 : f32 to vector<2x8x32xf32>
      %c0_26 = arith.constant 0 : index
      %c0_27 = arith.constant 0 : index
      %c0_28 = arith.constant 0 : index
      %21 = vector.load %arg10[%c0_26, %c0_27, %c0_28] : memref<2x8x32xf32, #tpu.memory_space<vmem>>, vector<2x8x32xf32>
      tpu.vector_store %arg10[%c0_26, %c0_27, %c0_28], %20 {strides = array<i32>} : memref<2x8x32xf32, #tpu.memory_space<vmem>>, vector<2x8x32xf32>,
    } else {
    }
    %c0 = arith.constant 0 : index
    %c0_1 = arith.constant 0 : index
    %c0_2 = arith.constant 0 : index
    %3 = vector.load %arg2[%c0, %c0_1, %c0_2] : memref<2x8x32xf32, #tpu.memory_space<vmem>>, vector<2x8x32xf32>
    %c0_3 = arith.constant 0 : index
    %c0_4 = arith.constant 0 : index
    %c0_5 = arith.constant 0 : index
    %4 = vector.load %arg3[%c0_3, %c0_4, %c0_5] : memref<2x8x32xf32, #tpu.memory_space<vmem>>, vector<2x8x32xf32>
    %c0_6 = arith.constant 0 : index
    %c0_7 = arith.constant 0 : index
    %c0_8 = arith.constant 0 : index
    %5 = vector.load %arg9[%c0_6, %c0_7, %c0_8] : memref<2x8x32xf32, #tpu.memory_space<vmem>>, vector<2x8x32xf32>
    %6 = vector.shape_cast %3 : vector<2x8x32xf32> to vector<2x1x8x32xf32>
    %cst = arith.constant dense<0.000000e+00> : vector<2x8x32xf32>
    %7 = vector.multi_reduction <add>, %6, %cst [1] : vector<2x1x8x32xf32> to vector<2x8x32xf32>
    %8 = arith.addf %5, %7 : vector<2x8x32xf32>
    %c0_9 = arith.constant 0 : index
    %c0_10 = arith.constant 0 : index
    %c0_11 = arith.constant 0 : index
    %9 = vector.load %arg9[%c0_9, %c0_10, %c0_11] : memref<2x8x32xf32, #tpu.memory_space<vmem>>, vector<2x8x32xf32>
    tpu.vector_store %arg9[%c0_9, %c0_10, %c0_11], %8 {strides = array<i32>} : memref<2x8x32xf32, #tpu.memory_space<vmem>>, vector<2x8x32xf32>,
    %c0_12 = arith.constant 0 : index
    %c0_13 = arith.constant 0 : index
    %c0_14 = arith.constant 0 : index
    %10 = vector.load %arg10[%c0_12, %c0_13, %c0_14] : memref<2x8x32xf32, #tpu.memory_space<vmem>>, vector<2x8x32xf32>
    %11 = vector.shape_cast %4 : vector<2x8x32xf32> to vector<2x1x8x32xf32>
    %cst_15 = arith.constant dense<0.000000e+00> : vector<2x8x32xf32>
    %12 = vector.multi_reduction <add>, %11, %cst_15 [1] : vector<2x1x8x32xf32> to vector<2x8x32xf32>
    %13 = arith.addf %10, %12 : vector<2x8x32xf32>
    %c0_16 = arith.constant 0 : index
    %c0_17 = arith.constant 0 : index
    %c0_18 = arith.constant 0 : index
    %14 = vector.load %arg10[%c0_16, %c0_17, %c0_18] : memref<2x8x32xf32, #tpu.memory_space<vmem>>, vector<2x8x32xf32>
    tpu.vector_store %arg10[%c0_16, %c0_17, %c0_18], %13 {strides = array<i32>} : memref<2x8x32xf32, #tpu.memory_space<vmem>>, vector<2x8x32xf32>,
    %c0_i32_19 = arith.constant 0 : i32
    %15 = arith.cmpi eq, %arg1, %c0_i32_19 : i32
    %16 = arith.extui %15 : i1 to i32
    %c0_i32_20 = arith.constant 0 : i32
    %17 = arith.cmpi ne, %16, %c0_i32_20 : i32
    scf.if %17 {
      %c0_21 = arith.constant 0 : index
      %c0_22 = arith.constant 0 : index
      %c0_23 = arith.constant 0 : index
      %18 = vector.load %arg9[%c0_21, %c0_22, %c0_23] : memref<2x8x32xf32, #tpu.memory_space<vmem>>, vector<2x8x32xf32>
      %cst_24 = arith.constant dense<0.000000e+00> : vector<2x32xf32>
      %19 = vector.multi_reduction <add>, %18, %cst_24 [1] : vector<2x8x32xf32> to vector<2x32xf32>
      %cst_25 = arith.constant 1.250000e-01 : f32
      %20 = vector.broadcast %cst_25 : f32 to vector<2x32xf32>
      %21 = arith.mulf %19, %20 : vector<2x32xf32>
      %c0_26 = arith.constant 0 : index
      %c0_27 = arith.constant 0 : index
      %c0_28 = arith.constant 0 : index
      %22 = vector.load %arg10[%c0_26, %c0_27, %c0_28] : memref<2x8x32xf32, #tpu.memory_space<vmem>>, vector<2x8x32xf32>
      %cst_29 = arith.constant dense<0.000000e+00> : vector<2x32xf32>
      %23 = vector.multi_reduction <add>, %22, %cst_29 [1] : vector<2x8x32xf32> to vector<2x32xf32>
      %cst_30 = arith.constant 1.250000e-01 : f32
      %24 = vector.broadcast %cst_30 : f32 to vector<2x32xf32>
      %25 = arith.mulf %23, %24 : vector<2x32xf32>
      %26 = arith.subf %21, %25 : vector<2x32xf32>
      %27 = math.absf %26 : vector<2x32xf32>
      %c0_31 = arith.constant 0 : index
      %c0_32 = arith.constant 0 : index
      %28 = vector.load %arg4[%c0_31, %c0_32] : memref<96x32xf32, #tpu.memory_space<vmem>>, vector<32x32xf32>
      %cst_33 = arith.constant dense<0.000000e+00> : vector<2x32xf32>
      %29 = tpu.matmul %21, %28, %cst_33 {dimension_numbers = #tpu.dot_dimension_numbers<[1], [0], [0], [1], [0, 0, 1, 1], [], []>} : vector<2x32xf32>, vector<32x32xf32>, vector<2x32xf32> -> vector<2x32xf32>
      %c32 = arith.constant 32 : index
      %c0_34 = arith.constant 0 : index
      %30 = vector.load %arg4[%c32, %c0_34] : memref<96x32xf32, #tpu.memory_space<vmem>>, vector<32x32xf32>
      %cst_35 = arith.constant dense<0.000000e+00> : vector<2x32xf32>
      %31 = tpu.matmul %25, %30, %cst_35 {dimension_numbers = #tpu.dot_dimension_numbers<[1], [0], [0], [1], [0, 0, 1, 1], [], []>} : vector<2x32xf32>, vector<32x32xf32>, vector<2x32xf32> -> vector<2x32xf32>
      %32 = arith.addf %29, %31 : vector<2x32xf32>
      %c64 = arith.constant 64 : index
      %c0_36 = arith.constant 0 : index
      %33 = vector.load %arg4[%c64, %c0_36] : memref<96x32xf32, #tpu.memory_space<vmem>>, vector<32x32xf32>
      %cst_37 = arith.constant dense<0.000000e+00> : vector<2x32xf32>
      %34 = tpu.matmul %27, %33, %cst_37 {dimension_numbers = #tpu.dot_dimension_numbers<[1], [0], [0], [1], [0, 0, 1, 1], [], []>} : vector<2x32xf32>, vector<32x32xf32>, vector<2x32xf32> -> vector<2x32xf32>
      %35 = arith.addf %32, %34 : vector<2x32xf32>
      %c0_38 = arith.constant 0 : index
      %c0_39 = arith.constant 0 : index
      %36 = vector.load %arg5[%c0_38, %c0_39] : memref<1x32xf32, #tpu.memory_space<vmem>>, vector<1x32xf32>
      %37 = vector.broadcast %36 : vector<1x32xf32> to vector<2x32xf32>
      %38 = arith.addf %35, %37 : vector<2x32xf32>
      %39 = math.tanh %38 : vector<2x32xf32>
      %c0_40 = arith.constant 0 : index
      %c0_41 = arith.constant 0 : index
      %40 = vector.load %arg6[%c0_40, %c0_41] : memref<32x2xf32, #tpu.memory_space<vmem>>, vector<32x2xf32>
      %cst_42 = arith.constant dense<0.000000e+00> : vector<2x2xf32>
      %41 = tpu.matmul %39, %40, %cst_42 {dimension_numbers = #tpu.dot_dimension_numbers<[1], [0], [0], [1], [0, 0, 1, 1], [], []>} : vector<2x32xf32>, vector<32x2xf32>, vector<2x2xf32> -> vector<2x2xf32>
      %c0_43 = arith.constant 0 : index
      %c0_44 = arith.constant 0 : index
      %42 = vector.load %arg7[%c0_43, %c0_44] : memref<1x2xf32, #tpu.memory_space<vmem>>, vector<1x2xf32>
      %43 = vector.broadcast %42 : vector<1x2xf32> to vector<2x2xf32>
      %44 = arith.addf %41, %43 : vector<2x2xf32>
      %c0_45 = arith.constant 0 : index
      %c0_46 = arith.constant 0 : index
      %45 = vector.load %arg8[%c0_45, %c0_46] : memref<2x2xf32, #tpu.memory_space<vmem>>, vector<2x2xf32>
      tpu.vector_store %arg8[%c0_45, %c0_46], %44 {strides = array<i32>} : memref<2x2xf32, #tpu.memory_space<vmem>>, vector<2x2xf32>,
    } else {
    }
    return
  }
  func.func @transform_0(%arg0: i32, %arg1: i32) -> (i32, i32, i32) {
    %c0_i32 = arith.constant 0 : i32
    %c0_i32_0 = arith.constant 0 : i32
    return %arg0, %arg1, %c0_i32 : i32, i32, i32
  }
  func.func @transform_1(%arg0: i32, %arg1: i32) -> (i32, i32, i32) {
    %c0_i32 = arith.constant 0 : i32
    %c0_i32_0 = arith.constant 0 : i32
    return %arg0, %arg1, %c0_i32 : i32, i32, i32
  }
  func.func @transform_2(%arg0: i32, %arg1: i32) -> (i32, i32) {
    %c0_i32 = arith.constant 0 : i32
    %c0_i32_0 = arith.constant 0 : i32
    %c0_i32_1 = arith.constant 0 : i32
    return %c0_i32, %c0_i32_0 : i32, i32
  }
  func.func @transform_3(%arg0: i32, %arg1: i32) -> (i32, i32) {
    %c0_i32 = arith.constant 0 : i32
    %c0_i32_0 = arith.constant 0 : i32
    %c0_i32_1 = arith.constant 0 : i32
    return %c0_i32, %c0_i32_0 : i32, i32
  }
  func.func @transform_4(%arg0: i32, %arg1: i32) -> (i32, i32) {
    %c0_i32 = arith.constant 0 : i32
    %c0_i32_0 = arith.constant 0 : i32
    %c0_i32_1 = arith.constant 0 : i32
    return %c0_i32, %c0_i32_0 : i32, i32
  }
  func.func @transform_5(%arg0: i32, %arg1: i32) -> (i32, i32) {
    %c0_i32 = arith.constant 0 : i32
    %c0_i32_0 = arith.constant 0 : i32
    %c0_i32_1 = arith.constant 0 : i32
    return %c0_i32, %c0_i32_0 : i32, i32
  }
  func.func @transform_6(%arg0: i32, %arg1: i32) -> (i32, i32) {
    %c0_i32 = arith.constant 0 : i32
    %c0_i32_0 = arith.constant 0 : i32
    return %arg0, %c0_i32 : i32, i32
  }
}

</mosaic_0001>

<llo_original>
// kernel: tpu_custom_call.1
$region0: #{tpu_custom_call.1}
  #allocation0 [shape = 'u32[]', space=smem, size = 0x4, offset = 0x4, fixed_abs, tag = 'smem constant byte address 0x4 - core index']
  #allocation1 [shape = 'u32[144,128]{1,0:T(1,128)}', space=vmem, size = 0x12000, scoped, tag = 'internal scratch']
  #allocation2 [shape = 'f32[2,8,32]{2,1,0:T(8,128)}', space=vmem, size = 0x2000, scoped, tag = 'scratch operand']
  #allocation3 [shape = 'f32[2,8,32]{2,1,0:T(8,128)}', space=vmem, size = 0x2000, scoped, tag = 'scratch operand']
  %s0 = inlined_call_operand.vmem [shape: f32[2,8,32], index: 0, kind: input, shape index: {}]
  %s1 = inlined_call_operand.vmem [shape: f32[2,8,32], index: 1, kind: input, shape index: {}]
  %s2 = inlined_call_operand.vmem [shape: f32[96,32], index: 2, kind: input, shape index: {}]
  %s3 = inlined_call_operand.vmem [shape: f32[1,32], index: 3, kind: input, shape index: {}]
  %s4 = inlined_call_operand.vmem [shape: f32[32,2], index: 4, kind: input, shape index: {}]
  %s5 = inlined_call_operand.vmem [shape: f32[1,2], index: 5, kind: input, shape index: {}]
  %s6 = inlined_call_operand.hbm [shape: f32[2,2], index: 6, kind: output, shape index: {}]
  %s7 = sld [smem:[#allocation0]]
  $region42: #{tpu_custom_call.1} parent=0
    _
  %s9 = ssub.s32 1, %s7
  %s10 = scalar_select 0, %s9, %s7
  $region1: #{tpu_custom_call.1} parent=0
    #allocation4 [shape = 'u8[1024]{0}', space=vmem, size = 0x400, scoped, tag = 'output window, operand 0, single buffered']
    #allocation5 [shape = 's32[1]{0}', space=sflag, size = 0x4, scoped, tag = 'scoped memory for tpu_custom_call.1']
    %11 = vsyncpa [#allocation5], 0
    // Predicated region
    $region2: #{tpu_custom_call.1} parent=1 // pred_check
      _
    $region3: #{tpu_custom_call.1} parent=1 // pred_check_branch
      %13 = sbr.rel (0) target = $region5
    $region4: #{tpu_custom_call.1} parent=1 // pred_region
      _
    $region5: #{tpu_custom_call.1} parent=1 // pred_fallthru
      _
    // Predicated region
    $region6: #{tpu_custom_call.1} parent=1 // pred_check
      _
    $region7: #{tpu_custom_call.1} parent=1 // pred_check_branch
      %15 = sbr.rel (0) target = $region9
    $region8: #{tpu_custom_call.1} parent=1 // pred_region
      _
    $region9: #{tpu_custom_call.1} parent=1 // pred_fallthru
      _
    // Predicated region
    $region10: #{tpu_custom_call.1} parent=1 // pred_check
      _
    $region11: #{tpu_custom_call.1} parent=1 // pred_check_branch
      %17 = sbr.rel (0) target = $region13
    $region12: #{tpu_custom_call.1} parent=1 // pred_region
      _
    $region13: #{tpu_custom_call.1} parent=1 // pred_fallthru
      _
    // Predicated region
    $region14: #{tpu_custom_call.1} parent=1 // pred_check
      _
    $region15: #{tpu_custom_call.1} parent=1 // pred_check_branch
      %19 = sbr.rel (0) target = $region17
    $region16: #{tpu_custom_call.1} parent=1 // pred_region
      _
    $region17: #{tpu_custom_call.1} parent=1 // pred_fallthru
      _
    // Predicated region
    $region18: #{tpu_custom_call.1} parent=1 // pred_check
      _
    $region19: #{tpu_custom_call.1} parent=1 // pred_check_branch
      %21 = sbr.rel (0) target = $region21
    $region20: #{tpu_custom_call.1} parent=1 // pred_region
      _
    $region21: #{tpu_custom_call.1} parent=1 // pred_fallthru
      _
    // Predicated region
    $region22: #{tpu_custom_call.1} parent=1 // pred_check
      _
    $region23: #{tpu_custom_call.1} parent=1 // pred_check_branch
      %23 = sbr.rel (0) target = $region25
    $region24: #{tpu_custom_call.1} parent=1 // pred_region
      _
    $region25: #{tpu_custom_call.1} parent=1 // pred_fallthru
      _
    %p24 = scmp.eq.s32.totalorder 0, 0
    // Predicated region
    $region26: #{tpu_custom_call.1} parent=1 // pred_check
      %p25 = pneg %p24
    $region27: #{tpu_custom_call.1} parent=1 // pred_check_branch
      %27 = sbr.rel (%p25) target = $region29
    $region28: #{tpu_custom_call.1} parent=1 // pred_region
      %vm28 = vcmask 261120
      %29 = vst.msk [vmem:[#allocation2] sm:$0xff] %vm28, 0.0
      %30 = vst.msk [vmem:[#allocation2 + $0x8] sm:$0xff] %vm28, 0.0
      %31 = vst.msk [vmem:[#allocation3] sm:$0xff] %vm28, 0.0
      %32 = vst.msk [vmem:[#allocation3 + $0x8] sm:$0xff] %vm28, 0.0
    $region29: #{tpu_custom_call.1} parent=1 // pred_fallthru
      _
    %v33 = vld [vmem:[%s0] sm:$0xff]
    %v34 = vld [vmem:[%s0 + $0x8] sm:$0xff]
    %v35 = vld [vmem:[%s1] sm:$0xff]
    %v36 = vld [vmem:[%s1 + $0x8] sm:$0xff]
    %v37 = vld [vmem:[#allocation2] sm:$0xff]
    %v38 = vld [vmem:[#allocation2 + $0x8] sm:$0xff]
    %v39 = vadd.f32 %v33, 0.0
    %v40 = vadd.f32 %v34, 0.0
    %v41 = vadd.f32 %v37, %v39
    %v42 = vadd.f32 %v38, %v40
    %vm43 = vcmask 261120
    %44 = vst.msk [vmem:[#allocation2] sm:$0xff] %vm43, %v41
    %45 = vst.msk [vmem:[#allocation2 + $0x8] sm:$0xff] %vm43, %v42
    %v46 = vld [vmem:[#allocation3] sm:$0xff]
    %v47 = vld [vmem:[#allocation3 + $0x8] sm:$0xff]
    %v48 = vadd.f32 %v35, 0.0
    %v49 = vadd.f32 %v36, 0.0
    %v50 = vadd.f32 %v46, %v48
    %v51 = vadd.f32 %v47, %v49
    %52 = vst.msk [vmem:[#allocation3] sm:$0xff] %vm43, %v50
    %53 = vst.msk [vmem:[#allocation3 + $0x8] sm:$0xff] %vm43, %v51
    // Predicated region
    $region30: #{tpu_custom_call.1} parent=1 // pred_check
      %p54 = pneg %p24
    $region31: #{tpu_custom_call.1} parent=1 // pred_check_branch
      %56 = sbr.rel (%p54) target = $region33
    $region32: #{tpu_custom_call.1} parent=1 // pred_region
      %v57 = vld [vmem:[#allocation2] sm:$0xff]
      %v58 = vld [vmem:[#allocation2 + $0x8] sm:$0xff]
      %v59 = vsel %vm43, %v57, 0.0
      %v60 = vrot.slane %v59, 4
      %v61 = vadd.f32 %v59, %v60
      %v62 = vrot.slane %v61, 2
      %v63 = vadd.f32 %v61, %v62
      %v64 = vrot.slane %v63, 1
      %v65 = vadd.f32 %v63, %v64
      %v66 = vsel %vm43, %v58, 0.0
      %v67 = vrot.slane %v66, 4
      %v68 = vadd.f32 %v66, %v67
      %v69 = vrot.slane %v68, 2
      %v70 = vadd.f32 %v68, %v69
      %v71 = vrot.slane %v70, 1
      %v72 = vadd.f32 %v70, %v71
      %v73 = vmul.f32 %v65, 0.125
      %v74 = vmul.f32 %v72, 0.125
      %v75 = vld [vmem:[#allocation3] sm:$0xff]
      %v76 = vld [vmem:[#allocation3 + $0x8] sm:$0xff]
      %v77 = vsel %vm43, %v75, 0.0
      %v78 = vrot.slane %v77, 4
      %v79 = vadd.f32 %v77, %v78
      %v80 = vrot.slane %v79, 2
      %v81 = vadd.f32 %v79, %v80
      %v82 = vrot.slane %v81, 1
      %v83 = vadd.f32 %v81, %v82
      %v84 = vsel %vm43, %v76, 0.0
      %v85 = vrot.slane %v84, 4
      %v86 = vadd.f32 %v84, %v85
      %v87 = vrot.slane %v86, 2
      %v88 = vadd.f32 %v86, %v87
      %v89 = vrot.slane %v88, 1
      %v90 = vadd.f32 %v88, %v89
      %v91 = vmul.f32 %v83, 0.125
      %v92 = vmul.f32 %v90, 0.125
      %v93 = vsub.f32 %v73, %v91
      %v94 = vsub.f32 %v74, %v92
      %v95 = vand.u32 2147483647, %v93
      %v96 = vand.u32 2147483647, %v94
      %v97 = vld [vmem:[%s2] sm:$0xff]
      %v98 = vld [vmem:[%s2 + $0x8] sm:$0xff]
      %v99 = vld [vmem:[%s2 + $0x10] sm:$0xff]
      %v100 = vld [vmem:[%s2 + $0x18] sm:$0xff]
      %v101 = vld [vmem:[%s2 + $0x20] sm:$0xff]
      %v102 = vld [vmem:[%s2 + $0x28] sm:$0xff]
      %v103 = vld [vmem:[%s2 + $0x30] sm:$0xff]
      %v104 = vld [vmem:[%s2 + $0x38] sm:$0xff]
      %vm107 = vcmask 1041409
      %v108 = vsel %vm107, %v92, %v91
      %v109 = vsel %vm43, %v108, 0
      %111 = vmatprep.subr.mxu0 0.0
      %112 = vmatpush1.msra.mxu0 %v101
      %113 = vmatprep.subr.mxu0 0.0
      %114 = vmatpush1.msra.mxu0 %v102
      %115 = vmatprep.subr.mxu0 0.0
      %116 = vmatpush1.msra.mxu0 %v103
      %117 = vmatprep.subr.mxu0 0.0
      %118 = vmatpush1.msra.mxu0 %v104
      %119 = vmatprep.subr.mxu0 0.0
      %120 = vmatpush1.msra.mxu0 0.0
      %121 = vmatprep.subr.mxu0 0.0
      %122 = vmatpush1.msra.mxu0 0.0
      %123 = vmatprep.subr.mxu0 0.0
      %124 = vmatpush1.msra.mxu0 0.0
      %125 = vmatprep.subr.mxu0 0.0
      %126 = vmatpush1.msra.mxu0 0.0
      %127 = vmatprep.subr.mxu0 0.0
      %128 = vmatpush1.msra.mxu0 0.0
      %129 = vmatprep.subr.mxu0 0.0
      %130 = vmatpush1.msra.mxu0 0.0
      %131 = vmatprep.subr.mxu0 0.0
      %132 = vmatpush1.msra.mxu0 0.0
      %133 = vmatprep.subr.mxu0 0.0
      %134 = vmatpush1.msra.mxu0 0.0
      %135 = vmatprep.subr.mxu0 0.0
      %136 = vmatpush1.msra.mxu0 0.0
      %137 = vmatprep.subr.mxu0 0.0
      %138 = vmatpush1.msra.mxu0 0.0
      %139 = vmatprep.subr.mxu0 0.0
      %140 = vmatpush1.msra.mxu0 0.0
      %141 = vmatprep.subr.mxu0 0.0
      %142 = vmatpush1.msra.mxu0 0.0
      %143 = vmatprep.subr.mxu0 0.0
      %144 = vmatpush1.msra.mxu0 0.0
      %145 = vmatprep.subr.mxu0 0.0
      %146 = vmatpush1.msra.mxu0 0.0
      %147 = vmatprep.subr.mxu0 0.0
      %148 = vmatpush1.msra.mxu0 0.0
      %149 = vmatprep.subr.mxu0 0.0
      %150 = vmatpush1.msra.mxu0 0.0
      %151 = vmatprep.subr.mxu0 0.0
      %152 = vmatpush1.msra.mxu0 0.0
      %153 = vmatprep.subr.mxu0 0.0
      %154 = vmatpush1.msra.mxu0 0.0
      %155 = vmatprep.subr.mxu0 0.0
      %156 = vmatpush1.msra.mxu0 0.0
      %157 = vmatprep.subr.mxu0 0.0
      %158 = vmatpush1.msra.mxu0 0.0
      %159 = vmatprep.subr.mxu0 0.0
      %160 = vmatpush1.msra.mxu0 0.0
      %161 = vmatprep.subr.mxu0 0.0
      %162 = vmatpush1.msra.mxu0 0.0
      %163 = vmatprep.subr.mxu0 0.0
      %164 = vmatpush1.msra.mxu0 0.0
      %165 = vmatprep.subr.mxu0 0.0
      %166 = vmatpush1.msra.mxu0 0.0
      %167 = vmatprep.subr.mxu0 0.0
      %168 = vmatpush1.msra.mxu0 0.0
      %169 = vmatprep.subr.mxu0 0.0
      %170 = vmatpush1.msra.mxu0 0.0
      %171 = vmatprep.subr.mxu0 0.0
      %172 = vmatpush1.msra.mxu0 0.0
      %173 = vmatprep.subr.mxu0 0.0
      %174 = vmatpush1.msra.mxu0 0.0
      %175 = vmatprep.mubr.f32.mxu0 0.0
      %176 = vmatmul.mubr.f32.gmra.mrb[0].mxu0 %v109
      %v177 = vpop.f32.mrb[0].mxu0
      %v178 = vadd.f32 0.0, %v177
      %v179 = vpop.f32.mrb[0].mxu0
      %180 = vdwg.mxu0
      %v183 = vsel %vm107, %v74, %v73
      %v184 = vsel %vm43, %v183, 0
      %186 = vmatprep.subr.mxu0 0.0
      %187 = vmatpush1.msra.mxu0 %v97
      %188 = vmatprep.subr.mxu0 0.0
      %189 = vmatpush1.msra.mxu0 %v98
      %190 = vmatprep.subr.mxu0 0.0
      %191 = vmatpush1.msra.mxu0 %v99
      %192 = vmatprep.subr.mxu0 0.0
      %193 = vmatpush1.msra.mxu0 %v100
      %194 = vmatprep.subr.mxu0 0.0
      %195 = vmatpush1.msra.mxu0 0.0
      %196 = vmatprep.subr.mxu0 0.0
      %197 = vmatpush1.msra.mxu0 0.0
      %198 = vmatprep.subr.mxu0 0.0
      %199 = vmatpush1.msra.mxu0 0.0
      %200 = vmatprep.subr.mxu0 0.0
      %201 = vmatpush1.msra.mxu0 0.0
      %202 = vmatprep.subr.mxu0 0.0
      %203 = vmatpush1.msra.mxu0 0.0
      %204 = vmatprep.subr.mxu0 0.0
      %205 = vmatpush1.msra.mxu0 0.0
      %206 = vmatprep.subr.mxu0 0.0
      %207 = vmatpush1.msra.mxu0 0.0
      %208 = vmatprep.subr.mxu0 0.0
      %209 = vmatpush1.msra.mxu0 0.0
      %210 = vmatprep.subr.mxu0 0.0
      %211 = vmatpush1.msra.mxu0 0.0
      %212 = vmatprep.subr.mxu0 0.0
      %213 = vmatpush1.msra.mxu0 0.0
      %214 = vmatprep.subr.mxu0 0.0
      %215 = vmatpush1.msra.mxu0 0.0
      %216 = vmatprep.subr.mxu0 0.0
      %217 = vmatpush1.msra.mxu0 0.0
      %218 = vmatprep.subr.mxu0 0.0
      %219 = vmatpush1.msra.mxu0 0.0
      %220 = vmatprep.subr.mxu0 0.0
      %221 = vmatpush1.msra.mxu0 0.0
      %222 = vmatprep.subr.mxu0 0.0
      %223 = vmatpush1.msra.mxu0 0.0
      %224 = vmatprep.subr.mxu0 0.0
      %225 = vmatpush1.msra.mxu0 0.0
      %226 = vmatprep.subr.mxu0 0.0
      %227 = vmatpush1.msra.mxu0 0.0
      %228 = vmatprep.subr.mxu0 0.0
      %229 = vmatpush1.msra.mxu0 0.0
      %230 = vmatprep.subr.mxu0 0.0
      %231 = vmatpush1.msra.mxu0 0.0
      %232 = vmatprep.subr.mxu0 0.0
      %233 = vmatpush1.msra.mxu0 0.0
      %234 = vmatprep.subr.mxu0 0.0
      %235 = vmatpush1.msra.mxu0 0.0
      %236 = vmatprep.subr.mxu0 0.0
      %237 = vmatpush1.msra.mxu0 0.0
      %238 = vmatprep.subr.mxu0 0.0
      %239 = vmatpush1.msra.mxu0 0.0
      %240 = vmatprep.subr.mxu0 0.0
      %241 = vmatpush1.msra.mxu0 0.0
      %242 = vmatprep.subr.mxu0 0.0
      %243 = vmatpush1.msra.mxu0 0.0
      %244 = vmatprep.subr.mxu0 0.0
      %245 = vmatpush1.msra.mxu0 0.0
      %246 = vmatprep.subr.mxu0 0.0
      %247 = vmatpush1.msra.mxu0 0.0
      %248 = vmatprep.subr.mxu0 0.0
      %249 = vmatpush1.msra.mxu0 0.0
      %250 = vmatprep.mubr.f32.mxu0 0.0
      %251 = vmatmul.mubr.f32.gmra.mrb[0].mxu0 %v184
      %v252 = vpop.f32.mrb[0].mxu0
      %v253 = vadd.f32 %v178, %v252
      %v254 = vpop.f32.mrb[0].mxu0
      %255 = vdwg.mxu0
      %v256 = vld [vmem:[%s2 + $0x40] sm:$0xff]
      %v257 = vld [vmem:[%s2 + $0x48] sm:$0xff]
      %v258 = vld [vmem:[%s2 + $0x50] sm:$0xff]
      %v259 = vld [vmem:[%s2 + $0x58] sm:$0xff]
      %v262 = vsel %vm107, %v96, %v95
      %v263 = vsel %vm43, %v262, 0
      %265 = vmatprep.subr.mxu0 0.0
      %266 = vmatpush1.msra.mxu0 %v256
      %267 = vmatprep.subr.mxu0 0.0
      %268 = vmatpush1.msra.mxu0 %v257
      %269 = vmatprep.subr.mxu0 0.0
      %270 = vmatpush1.msra.mxu0 %v258
      %271 = vmatprep.subr.mxu0 0.0
      %272 = vmatpush1.msra.mxu0 %v259
      %273 = vmatprep.subr.mxu0 0.0
      %274 = vmatpush1.msra.mxu0 0.0
      %275 = vmatprep.subr.mxu0 0.0
      %276 = vmatpush1.msra.mxu0 0.0
      %277 = vmatprep.subr.mxu0 0.0
      %278 = vmatpush1.msra.mxu0 0.0
      %279 = vmatprep.subr.mxu0 0.0
      %280 = vmatpush1.msra.mxu0 0.0
      %281 = vmatprep.subr.mxu0 0.0
      %282 = vmatpush1.msra.mxu0 0.0
      %283 = vmatprep.subr.mxu0 0.0
      %284 = vmatpush1.msra.mxu0 0.0
      %285 = vmatprep.subr.mxu0 0.0
      %286 = vmatpush1.msra.mxu0 0.0
      %287 = vmatprep.subr.mxu0 0.0
      %288 = vmatpush1.msra.mxu0 0.0
      %289 = vmatprep.subr.mxu0 0.0
      %290 = vmatpush1.msra.mxu0 0.0
      %291 = vmatprep.subr.mxu0 0.0
      %292 = vmatpush1.msra.mxu0 0.0
      %293 = vmatprep.subr.mxu0 0.0
      %294 = vmatpush1.msra.mxu0 0.0
      %295 = vmatprep.subr.mxu0 0.0
      %296 = vmatpush1.msra.mxu0 0.0
      %297 = vmatprep.subr.mxu0 0.0
      %298 = vmatpush1.msra.mxu0 0.0
      %299 = vmatprep.subr.mxu0 0.0
      %300 = vmatpush1.msra.mxu0 0.0
      %301 = vmatprep.subr.mxu0 0.0
      %302 = vmatpush1.msra.mxu0 0.0
      %303 = vmatprep.subr.mxu0 0.0
      %304 = vmatpush1.msra.mxu0 0.0
      %305 = vmatprep.subr.mxu0 0.0
      %306 = vmatpush1.msra.mxu0 0.0
      %307 = vmatprep.subr.mxu0 0.0
      %308 = vmatpush1.msra.mxu0 0.0
      %309 = vmatprep.subr.mxu0 0.0
      %310 = vmatpush1.msra.mxu0 0.0
      %311 = vmatprep.subr.mxu0 0.0
      %312 = vmatpush1.msra.mxu0 0.0
      %313 = vmatprep.subr.mxu0 0.0
      %314 = vmatpush1.msra.mxu0 0.0
      %315 = vmatprep.subr.mxu0 0.0
      %316 = vmatpush1.msra.mxu0 0.0
      %317 = vmatprep.subr.mxu0 0.0
      %318 = vmatpush1.msra.mxu0 0.0
      %319 = vmatprep.subr.mxu0 0.0
      %320 = vmatpush1.msra.mxu0 0.0
      %321 = vmatprep.subr.mxu0 0.0
      %322 = vmatpush1.msra.mxu0 0.0
      %323 = vmatprep.subr.mxu0 0.0
      %324 = vmatpush1.msra.mxu0 0.0
      %325 = vmatprep.subr.mxu0 0.0
      %326 = vmatpush1.msra.mxu0 0.0
      %327 = vmatprep.subr.mxu0 0.0
      %328 = vmatpush1.msra.mxu0 0.0
      %329 = vmatprep.mubr.f32.mxu0 0.0
      %330 = vmatmul.mubr.f32.gmra.mrb[0].mxu0 %v263
      %v331 = vpop.f32.mrb[0].mxu0
      %v332 = vadd.f32 0.0, %v331
      %v333 = vpop.f32.mrb[0].mxu0
      %334 = vdwg.mxu0
      %v335 = vadd.f32 %v253, %v332
      %v336 = vld [vmem:[%s3] sm:$0x1]
      %v338 = vlaneseq
      %v339 = vshrl.u32 %v338, 7
      %v340 = vsub.s32 0, %v339
      %v341 = vrot.slane %v336, %v340
      %v343 = vadd.f32 %v335, %v341
      %v344 = vtanh.pop %v343
      %v345 = vld [vmem:[%s4] sm:$0xff]
      %v346 = vld [vmem:[%s4 + $0x8] sm:$0xff]
      %v347 = vld [vmem:[%s4 + $0x10] sm:$0xff]
      %v348 = vld [vmem:[%s4 + $0x18] sm:$0xff]
      %v349 = vld [vmem:[%s5] sm:$0x1]
      %v351 = vlaneseq
      %v352 = vshrl.u32 %v351, 7
      %v353 = vsub.s32 0, %v352
      %v354 = vrot.slane %v349, %v353
      %v357 = vsel %vm43, %v344, 0
      %359 = vmatprep.subr.mxu0 0.0
      %360 = vmatpush1.msra.mxu0 %v345
      %361 = vmatprep.subr.mxu0 0.0
      %362 = vmatpush1.msra.mxu0 %v346
      %363 = vmatprep.subr.mxu0 0.0
      %364 = vmatpush1.msra.mxu0 %v347
      %365 = vmatprep.subr.mxu0 0.0
      %366 = vmatpush1.msra.mxu0 %v348
      %367 = vmatprep.subr.mxu0 0.0
      %368 = vmatpush1.msra.mxu0 0.0
      %369 = vmatprep.subr.mxu0 0.0
      %370 = vmatpush1.msra.mxu0 0.0
      %371 = vmatprep.subr.mxu0 0.0
      %372 = vmatpush1.msra.mxu0 0.0
      %373 = vmatprep.subr.mxu0 0.0
      %374 = vmatpush1.msra.mxu0 0.0
      %375 = vmatprep.subr.mxu0 0.0
      %376 = vmatpush1.msra.mxu0 0.0
      %377 = vmatprep.subr.mxu0 0.0
      %378 = vmatpush1.msra.mxu0 0.0
      %379 = vmatprep.subr.mxu0 0.0
      %380 = vmatpush1.msra.mxu0 0.0
      %381 = vmatprep.subr.mxu0 0.0
      %382 = vmatpush1.msra.mxu0 0.0
      %383 = vmatprep.subr.mxu0 0.0
      %384 = vmatpush1.msra.mxu0 0.0
      %385 = vmatprep.subr.mxu0 0.0
      %386 = vmatpush1.msra.mxu0 0.0
      %387 = vmatprep.subr.mxu0 0.0
      %388 = vmatpush1.msra.mxu0 0.0
      %389 = vmatprep.subr.mxu0 0.0
      %390 = vmatpush1.msra.mxu0 0.0
      %391 = vmatprep.subr.mxu0 0.0
      %392 = vmatpush1.msra.mxu0 0.0
      %393 = vmatprep.subr.mxu0 0.0
      %394 = vmatpush1.msra.mxu0 0.0
      %395 = vmatprep.subr.mxu0 0.0
      %396 = vmatpush1.msra.mxu0 0.0
      %397 = vmatprep.subr.mxu0 0.0
      %398 = vmatpush1.msra.mxu0 0.0
      %399 = vmatprep.subr.mxu0 0.0
      %400 = vmatpush1.msra.mxu0 0.0
      %401 = vmatprep.subr.mxu0 0.0
      %402 = vmatpush1.msra.mxu0 0.0
      %403 = vmatprep.subr.mxu0 0.0
      %404 = vmatpush1.msra.mxu0 0.0
      %405 = vmatprep.subr.mxu0 0.0
      %406 = vmatpush1.msra.mxu0 0.0
      %407 = vmatprep.subr.mxu0 0.0
      %408 = vmatpush1.msra.mxu0 0.0
      %409 = vmatprep.subr.mxu0 0.0
      %410 = vmatpush1.msra.mxu0 0.0
      %411 = vmatprep.subr.mxu0 0.0
      %412 = vmatpush1.msra.mxu0 0.0
      %413 = vmatprep.subr.mxu0 0.0
      %414 = vmatpush1.msra.mxu0 0.0
      %415 = vmatprep.subr.mxu0 0.0
      %416 = vmatpush1.msra.mxu0 0.0
      %417 = vmatprep.subr.mxu0 0.0
      %418 = vmatpush1.msra.mxu0 0.0
      %419 = vmatprep.subr.mxu0 0.0
      %420 = vmatpush1.msra.mxu0 0.0
      %421 = vmatprep.subr.mxu0 0.0
      %422 = vmatpush1.msra.mxu0 0.0
      %423 = vmatprep.mubr.f32.mxu0 0.0
      %424 = vmatmul.mubr.f32.gmra.mrb[0].mxu0 %v357
      %v425 = vpop.f32.mrb[0].mxu0
      %v426 = vadd.f32 %v354, %v425
      %v427 = vpop.f32.mrb[0].mxu0
      %428 = vdwg.mxu0
      %vm429 = vcmask 9216
      %430 = vst.msk [vmem:[#allocation4] sm:$0x3] %vm429, %v426
    $region33: #{tpu_custom_call.1} parent=1 // pred_fallthru
      _
    // Predicated region
    $region34: #{tpu_custom_call.1} parent=1 // pred_check
      _
    $region35: #{tpu_custom_call.1} parent=1 // pred_check_branch
      %432 = sbr.rel (0) target = $region37
    $region36: #{tpu_custom_call.1} parent=1 // pred_region
      %s434 = ssub.s32 32, 32
      %435 = vsyncadd [#allocation5], %s434
      %s437 = sshll.u32 [#allocation4], 4
      %s438 = int_to_ptr.vmem [resolvable:$true] %s437
      %440 = dma.vmem_to_hbm [thread:$0]  %s438, 32, %s6, [#allocation5]
    $region37: #{tpu_custom_call.1} parent=1 // pred_fallthru
      _
    // Predicated region
    $region38: #{tpu_custom_call.1} parent=1 // pred_check
      _
    $region39: #{tpu_custom_call.1} parent=1 // pred_check_branch
      %442 = sbr.rel (0) target = $region41
    $region40: #{tpu_custom_call.1} parent=1 // pred_region
      %443 = dma.done [#allocation5], 32
    $region41: #{tpu_custom_call.1} parent=1 // pred_fallthru
      _
    %444 = vsyncpa [#allocation5], 1

// kernel: tpu_custom_call.1
$region0: #{tpu_custom_call.1}
  #allocation0 [shape = 'u32[]', space=smem, size = 0x4, offset = 0x4, fixed_abs, tag = 'smem constant byte address 0x4 - core index']
  #allocation1 [shape = 'u32[144,128]{1,0:T(1,128)}', space=vmem, size = 0x12000, scoped, tag = 'internal scratch']
  #allocation2 [shape = 'f32[2,8,32]{2,1,0:T(8,128)}', space=vmem, size = 0x2000, scoped, tag = 'scratch operand']
  #allocation3 [shape = 'f32[2,8,32]{2,1,0:T(8,128)}', space=vmem, size = 0x2000, scoped, tag = 'scratch operand']
  %s0 = inlined_call_operand.vmem [shape: f32[2,8,32], index: 0, kind: input, shape index: {}]
  %s1 = inlined_call_operand.vmem [shape: f32[2,8,32], index: 1, kind: input, shape index: {}]
  %s2 = inlined_call_operand.vmem [shape: f32[96,32], index: 2, kind: input, shape index: {}]
  %s3 = inlined_call_operand.vmem [shape: f32[1,32], index: 3, kind: input, shape index: {}]
  %s4 = inlined_call_operand.vmem [shape: f32[32,2], index: 4, kind: input, shape index: {}]
  %s5 = inlined_call_operand.vmem [shape: f32[1,2], index: 5, kind: input, shape index: {}]
  %s6 = inlined_call_operand.hbm [shape: f32[2,2], index: 6, kind: output, shape index: {}]
  %s7 = sld [smem:[#allocation0]]
  $region42: #{tpu_custom_call.1} parent=0
    _
  %s9 = ssub.s32 1, %s7
  %s10 = scalar_select 0, %s9, %s7
  $region1: #{tpu_custom_call.1} parent=0
    #allocation4 [shape = 'u8[1024]{0}', space=vmem, size = 0x400, scoped, tag = 'output window, operand 0, single buffered']
    #allocation5 [shape = 's32[1]{0}', space=sflag, size = 0x4, scoped, tag = 'scoped memory for tpu_custom_call.1']
    %11 = vsyncpa [#allocation5], 0
    // Predicated region
    $region2: #{tpu_custom_call.1} parent=1 // pred_check
      _
    $region3: #{tpu_custom_call.1} parent=1 // pred_check_branch
      %13 = sbr.rel (0) target = $region5
    $region4: #{tpu_custom_call.1} parent=1 // pred_region
      _
    $region5: #{tpu_custom_call.1} parent=1 // pred_fallthru
      _
    // Predicated region
    $region6: #{tpu_custom_call.1} parent=1 // pred_check
      _
    $region7: #{tpu_custom_call.1} parent=1 // pred_check_branch
      %15 = sbr.rel (0) target = $region9
    $region8: #{tpu_custom_call.1} parent=1 // pred_region
      _
    $region9: #{tpu_custom_call.1} parent=1 // pred_fallthru
      _
    // Predicated region
    $region10: #{tpu_custom_call.1} parent=1 // pred_check
      _
    $region11: #{tpu_custom_call.1} parent=1 // pred_check_branch
      %17 = sbr.rel (0) target = $region13
    $region12: #{tpu_custom_call.1} parent=1 // pred_region
      _
    $region13: #{tpu_custom_call.1} parent=1 // pred_fallthru
      _
    // Predicated region
    $region14: #{tpu_custom_call.1} parent=1 // pred_check
      _
    $region15: #{tpu_custom_call.1} parent=1 // pred_check_branch
      %19 = sbr.rel (0) target = $region17
    $region16: #{tpu_custom_call.1} parent=1 // pred_region
      _
    $region17: #{tpu_custom_call.1} parent=1 // pred_fallthru
      _
    // Predicated region
    $region18: #{tpu_custom_call.1} parent=1 // pred_check
      _
    $region19: #{tpu_custom_call.1} parent=1 // pred_check_branch
      %21 = sbr.rel (0) target = $region21
    $region20: #{tpu_custom_call.1} parent=1 // pred_region
      _
    $region21: #{tpu_custom_call.1} parent=1 // pred_fallthru
      _
    // Predicated region
    $region22: #{tpu_custom_call.1} parent=1 // pred_check
      _
    $region23: #{tpu_custom_call.1} parent=1 // pred_check_branch
      %23 = sbr.rel (0) target = $region25
    $region24: #{tpu_custom_call.1} parent=1 // pred_region
      _
    $region25: #{tpu_custom_call.1} parent=1 // pred_fallthru
      _
    %p24 = scmp.eq.s32.totalorder 0, 0
    // Predicated region
    $region26: #{tpu_custom_call.1} parent=1 // pred_check
      %p25 = pneg %p24
    $region27: #{tpu_custom_call.1} parent=1 // pred_check_branch
      %27 = sbr.rel (%p25) target = $region29
    $region28: #{tpu_custom_call.1} parent=1 // pred_region
      %vm28 = vcmask 261120
      %29 = vst.msk [vmem:[#allocation2] sm:$0xff] %vm28, 0.0
      %30 = vst.msk [vmem:[#allocation2 + $0x8] sm:$0xff] %vm28, 0.0
      %31 = vst.msk [vmem:[#allocation3] sm:$0xff] %vm28, 0.0
      %32 = vst.msk [vmem:[#allocation3 + $0x8] sm:$0xff] %vm28, 0.0
    $region29: #{tpu_custom_call.1} parent=1 // pred_fallthru
      _
    %v33 = vld [vmem:[%s0] sm:$0xff]
    %v34 = vld [vmem:[%s0 + $0x8] sm:$0xff]
    %v35 = vld [vmem:[%s1] sm:$0xff]
    %v36 = vld [vmem:[%s1 + $0x8] sm:$0xff]
    %v37 = vld [vmem:[#allocation2] sm:$0xff]
    %v38 = vld [vmem:[#allocation2 + $0x8] sm:$0xff]
    %v39 = vadd.f32 %v33, 0.0
    %v40 = vadd.f32 %v34, 0.0
    %v41 = vadd.f32 %v37, %v39
    %v42 = vadd.f32 %v38, %v40
    %vm43 = vcmask 261120
    %44 = vst.msk [vmem:[#allocation2] sm:$0xff] %vm43, %v41
    %45 = vst.msk [vmem:[#allocation2 + $0x8] sm:$0xff] %vm43, %v42
    %v46 = vld [vmem:[#allocation3] sm:$0xff]
    %v47 = vld [vmem:[#allocation3 + $0x8] sm:$0xff]
    %v48 = vadd.f32 %v35, 0.0
    %v49 = vadd.f32 %v36, 0.0
    %v50 = vadd.f32 %v46, %v48
    %v51 = vadd.f32 %v47, %v49
    %52 = vst.msk [vmem:[#allocation3] sm:$0xff] %vm43, %v50
    %53 = vst.msk [vmem:[#allocation3 + $0x8] sm:$0xff] %vm43, %v51
    // Predicated region
    $region30: #{tpu_custom_call.1} parent=1 // pred_check
      %p54 = pneg %p24
    $region31: #{tpu_custom_call.1} parent=1 // pred_check_branch
      %56 = sbr.rel (%p54) target = $region33
    $region32: #{tpu_custom_call.1} parent=1 // pred_region
      %v57 = vld [vmem:[#allocation2] sm:$0xff]
      %v58 = vld [vmem:[#allocation2 + $0x8] sm:$0xff]
      %v59 = vsel %vm43, %v57, 0.0
      %v60 = vrot.slane %v59, 4
      %v61 = vadd.f32 %v59, %v60
      %v62 = vrot.slane %v61, 2
      %v63 = vadd.f32 %v61, %v62
      %v64 = vrot.slane %v63, 1
      %v65 = vadd.f32 %v63, %v64
      %v66 = vsel %vm43, %v58, 0.0
      %v67 = vrot.slane %v66, 4
      %v68 = vadd.f32 %v66, %v67
      %v69 = vrot.slane %v68, 2
      %v70 = vadd.f32 %v68, %v69
      %v71 = vrot.slane %v70, 1
      %v72 = vadd.f32 %v70, %v71
      %v73 = vmul.f32 %v65, 0.125
      %v74 = vmul.f32 %v72, 0.125
      %v75 = vld [vmem:[#allocation3] sm:$0xff]
      %v76 = vld [vmem:[#allocation3 + $0x8] sm:$0xff]
      %v77 = vsel %vm43, %v75, 0.0
      %v78 = vrot.slane %v77, 4
      %v79 = vadd.f32 %v77, %v78
      %v80 = vrot.slane %v79, 2
      %v81 = vadd.f32 %v79, %v80
      %v82 = vrot.slane %v81, 1
      %v83 = vadd.f32 %v81, %v82
      %v84 = vsel %vm43, %v76, 0.0
      %v85 = vrot.slane %v84, 4
      %v86 = vadd.f32 %v84, %v85
      %v87 = vrot.slane %v86, 2
      %v88 = vadd.f32 %v86, %v87
      %v89 = vrot.slane %v88, 1
      %v90 = vadd.f32 %v88, %v89
      %v91 = vmul.f32 %v83, 0.125
      %v92 = vmul.f32 %v90, 0.125
      %v93 = vsub.f32 %v73, %v91
      %v94 = vsub.f32 %v74, %v92
      %v95 = vand.u32 2147483647, %v93
      %v96 = vand.u32 2147483647, %v94
      %v97 = vld [vmem:[%s2] sm:$0xff]
      %v98 = vld [vmem:[%s2 + $0x8] sm:$0xff]
      %v99 = vld [vmem:[%s2 + $0x10] sm:$0xff]
      %v100 = vld [vmem:[%s2 + $0x18] sm:$0xff]
      %v101 = vld [vmem:[%s2 + $0x20] sm:$0xff]
      %v102 = vld [vmem:[%s2 + $0x28] sm:$0xff]
      %v103 = vld [vmem:[%s2 + $0x30] sm:$0xff]
      %v104 = vld [vmem:[%s2 + $0x38] sm:$0xff]
      %vm107 = vcmask 1041409
      %v108 = vsel %vm107, %v92, %v91
      %v109 = vsel %vm43, %v108, 0
      %111 = vmatprep.subr.mxu0 0.0
      %112 = vmatpush1.msra.mxu0 %v101
      %113 = vmatprep.subr.mxu0 0.0
      %114 = vmatpush1.msra.mxu0 %v102
      %115 = vmatprep.subr.mxu0 0.0
      %116 = vmatpush1.msra.mxu0 %v103
      %117 = vmatprep.subr.mxu0 0.0
      %118 = vmatpush1.msra.mxu0 %v104
      %119 = vmatprep.subr.mxu0 0.0
      %120 = vmatpush1.msra.mxu0 0.0
      %121 = vmatprep.subr.mxu0 0.0
      %122 = vmatpush1.msra.mxu0 0.0
      %123 = vmatprep.subr.mxu0 0.0
      %124 = vmatpush1.msra.mxu0 0.0
      %125 = vmatprep.subr.mxu0 0.0
      %126 = vmatpush1.msra.mxu0 0.0
      %127 = vmatprep.subr.mxu0 0.0
      %128 = vmatpush1.msra.mxu0 0.0
      %129 = vmatprep.subr.mxu0 0.0
      %130 = vmatpush1.msra.mxu0 0.0
      %131 = vmatprep.subr.mxu0 0.0
      %132 = vmatpush1.msra.mxu0 0.0
      %133 = vmatprep.subr.mxu0 0.0
      %134 = vmatpush1.msra.mxu0 0.0
      %135 = vmatprep.subr.mxu0 0.0
      %136 = vmatpush1.msra.mxu0 0.0
      %137 = vmatprep.subr.mxu0 0.0
      %138 = vmatpush1.msra.mxu0 0.0
      %139 = vmatprep.subr.mxu0 0.0
      %140 = vmatpush1.msra.mxu0 0.0
      %141 = vmatprep.subr.mxu0 0.0
      %142 = vmatpush1.msra.mxu0 0.0
      %143 = vmatprep.subr.mxu0 0.0
      %144 = vmatpush1.msra.mxu0 0.0
      %145 = vmatprep.subr.mxu0 0.0
      %146 = vmatpush1.msra.mxu0 0.0
      %147 = vmatprep.subr.mxu0 0.0
      %148 = vmatpush1.msra.mxu0 0.0
      %149 = vmatprep.subr.mxu0 0.0
      %150 = vmatpush1.msra.mxu0 0.0
      %151 = vmatprep.subr.mxu0 0.0
      %152 = vmatpush1.msra.mxu0 0.0
      %153 = vmatprep.subr.mxu0 0.0
      %154 = vmatpush1.msra.mxu0 0.0
      %155 = vmatprep.subr.mxu0 0.0
      %156 = vmatpush1.msra.mxu0 0.0
      %157 = vmatprep.subr.mxu0 0.0
      %158 = vmatpush1.msra.mxu0 0.0
      %159 = vmatprep.subr.mxu0 0.0
      %160 = vmatpush1.msra.mxu0 0.0
      %161 = vmatprep.subr.mxu0 0.0
      %162 = vmatpush1.msra.mxu0 0.0
      %163 = vmatprep.subr.mxu0 0.0
      %164 = vmatpush1.msra.mxu0 0.0
      %165 = vmatprep.subr.mxu0 0.0
      %166 = vmatpush1.msra.mxu0 0.0
      %167 = vmatprep.subr.mxu0 0.0
      %168 = vmatpush1.msra.mxu0 0.0
      %169 = vmatprep.subr.mxu0 0.0
      %170 = vmatpush1.msra.mxu0 0.0
      %171 = vmatprep.subr.mxu0 0.0
      %172 = vmatpush1.msra.mxu0 0.0
      %173 = vmatprep.subr.mxu0 0.0
      %174 = vmatpush1.msra.mxu0 0.0
      %175 = vmatprep.mubr.f32.mxu0 0.0
      %176 = vmatmul.mubr.f32.gmra.mrb[0].mxu0 %v109
      %v177 = vpop.f32.mrb[0].mxu0
      %v178 = vadd.f32 0.0, %v177
      %v179 = vpop.f32.mrb[0].mxu0
      %180 = vdwg.mxu0
      %v183 = vsel %vm107, %v74, %v73
      %v184 = vsel %vm43, %v183, 0
      %186 = vmatprep.subr.mxu0 0.0
      %187 = vmatpush1.msra.mxu0 %v97
      %188 = vmatprep.subr.mxu0 0.0
      %189 = vmatpush1.msra.mxu0 %v98
      %190 = vmatprep.subr.mxu0 0.0
      %191 = vmatpush1.msra.mxu0 %v99
      %192 = vmatprep.subr.mxu0 0.0
      %193 = vmatpush1.msra.mxu0 %v100
      %194 = vmatprep.subr.mxu0 0.0
      %195 = vmatpush1.msra.mxu0 0.0
      %196 = vmatprep.subr.mxu0 0.0
      %197 = vmatpush1.msra.mxu0 0.0
      %198 = vmatprep.subr.mxu0 0.0
      %199 = vmatpush1.msra.mxu0 0.0
      %200 = vmatprep.subr.mxu0 0.0
      %201 = vmatpush1.msra.mxu0 0.0
      %202 = vmatprep.subr.mxu0 0.0
      %203 = vmatpush1.msra.mxu0 0.0
      %204 = vmatprep.subr.mxu0 0.0
      %205 = vmatpush1.msra.mxu0 0.0
      %206 = vmatprep.subr.mxu0 0.0
      %207 = vmatpush1.msra.mxu0 0.0
      %208 = vmatprep.subr.mxu0 0.0
      %209 = vmatpush1.msra.mxu0 0.0
      %210 = vmatprep.subr.mxu0 0.0
      %211 = vmatpush1.msra.mxu0 0.0
      %212 = vmatprep.subr.mxu0 0.0
      %213 = vmatpush1.msra.mxu0 0.0
      %214 = vmatprep.subr.mxu0 0.0
      %215 = vmatpush1.msra.mxu0 0.0
      %216 = vmatprep.subr.mxu0 0.0
      %217 = vmatpush1.msra.mxu0 0.0
      %218 = vmatprep.subr.mxu0 0.0
      %219 = vmatpush1.msra.mxu0 0.0
      %220 = vmatprep.subr.mxu0 0.0
      %221 = vmatpush1.msra.mxu0 0.0
      %222 = vmatprep.subr.mxu0 0.0
      %223 = vmatpush1.msra.mxu0 0.0
      %224 = vmatprep.subr.mxu0 0.0
      %225 = vmatpush1.msra.mxu0 0.0
      %226 = vmatprep.subr.mxu0 0.0
      %227 = vmatpush1.msra.mxu0 0.0
      %228 = vmatprep.subr.mxu0 0.0
      %229 = vmatpush1.msra.mxu0 0.0
      %230 = vmatprep.subr.mxu0 0.0
      %231 = vmatpush1.msra.mxu0 0.0
      %232 = vmatprep.subr.mxu0 0.0
      %233 = vmatpush1.msra.mxu0 0.0
      %234 = vmatprep.subr.mxu0 0.0
      %235 = vmatpush1.msra.mxu0 0.0
      %236 = vmatprep.subr.mxu0 0.0
      %237 = vmatpush1.msra.mxu0 0.0
      %238 = vmatprep.subr.mxu0 0.0
      %239 = vmatpush1.msra.mxu0 0.0
      %240 = vmatprep.subr.mxu0 0.0
      %241 = vmatpush1.msra.mxu0 0.0
      %242 = vmatprep.subr.mxu0 0.0
      %243 = vmatpush1.msra.mxu0 0.0
      %244 = vmatprep.subr.mxu0 0.0
      %245 = vmatpush1.msra.mxu0 0.0
      %246 = vmatprep.subr.mxu0 0.0
      %247 = vmatpush1.msra.mxu0 0.0
      %248 = vmatprep.subr.mxu0 0.0
      %249 = vmatpush1.msra.mxu0 0.0
      %250 = vmatprep.mubr.f32.mxu0 0.0
      %251 = vmatmul.mubr.f32.gmra.mrb[0].mxu0 %v184
      %v252 = vpop.f32.mrb[0].mxu0
      %v253 = vadd.f32 %v178, %v252
      %v254 = vpop.f32.mrb[0].mxu0
      %255 = vdwg.mxu0
      %v256 = vld [vmem:[%s2 + $0x40] sm:$0xff]
      %v257 = vld [vmem:[%s2 + $0x48] sm:$0xff]
      %v258 = vld [vmem:[%s2 + $0x50] sm:$0xff]
      %v259 = vld [vmem:[%s2 + $0x58] sm:$0xff]
      %v262 = vsel %vm107, %v96, %v95
      %v263 = vsel %vm43, %v262, 0
      %265 = vmatprep.subr.mxu0 0.0
      %266 = vmatpush1.msra.mxu0 %v256
      %267 = vmatprep.subr.mxu0 0.0
      %268 = vmatpush1.msra.mxu0 %v257
      %269 = vmatprep.subr.mxu0 0.0
      %270 = vmatpush1.msra.mxu0 %v258
      %271 = vmatprep.subr.mxu0 0.0
      %272 = vmatpush1.msra.mxu0 %v259
      %273 = vmatprep.subr.mxu0 0.0
      %274 = vmatpush1.msra.mxu0 0.0
      %275 = vmatprep.subr.mxu0 0.0
      %276 = vmatpush1.msra.mxu0 0.0
      %277 = vmatprep.subr.mxu0 0.0
      %278 = vmatpush1.msra.mxu0 0.0
      %279 = vmatprep.subr.mxu0 0.0
      %280 = vmatpush1.msra.mxu0 0.0
      %281 = vmatprep.subr.mxu0 0.0
      %282 = vmatpush1.msra.mxu0 0.0
      %283 = vmatprep.subr.mxu0 0.0
      %284 = vmatpush1.msra.mxu0 0.0
      %285 = vmatprep.subr.mxu0 0.0
      %286 = vmatpush1.msra.mxu0 0.0
      %287 = vmatprep.subr.mxu0 0.0
      %288 = vmatpush1.msra.mxu0 0.0
      %289 = vmatprep.subr.mxu0 0.0
      %290 = vmatpush1.msra.mxu0 0.0
      %291 = vmatprep.subr.mxu0 0.0
      %292 = vmatpush1.msra.mxu0 0.0
      %293 = vmatprep.subr.mxu0 0.0
      %294 = vmatpush1.msra.mxu0 0.0
      %295 = vmatprep.subr.mxu0 0.0
      %296 = vmatpush1.msra.mxu0 0.0
      %297 = vmatprep.subr.mxu0 0.0
      %298 = vmatpush1.msra.mxu0 0.0
      %299 = vmatprep.subr.mxu0 0.0
      %300 = vmatpush1.msra.mxu0 0.0
      %301 = vmatprep.subr.mxu0 0.0
      %302 = vmatpush1.msra.mxu0 0.0
      %303 = vmatprep.subr.mxu0 0.0
      %304 = vmatpush1.msra.mxu0 0.0
      %305 = vmatprep.subr.mxu0 0.0
      %306 = vmatpush1.msra.mxu0 0.0
      %307 = vmatprep.subr.mxu0 0.0
      %308 = vmatpush1.msra.mxu0 0.0
      %309 = vmatprep.subr.mxu0 0.0
      %310 = vmatpush1.msra.mxu0 0.0
      %311 = vmatprep.subr.mxu0 0.0
      %312 = vmatpush1.msra.mxu0 0.0
      %313 = vmatprep.subr.mxu0 0.0
      %314 = vmatpush1.msra.mxu0 0.0
      %315 = vmatprep.subr.mxu0 0.0
      %316 = vmatpush1.msra.mxu0 0.0
      %317 = vmatprep.subr.mxu0 0.0
      %318 = vmatpush1.msra.mxu0 0.0
      %319 = vmatprep.subr.mxu0 0.0
      %320 = vmatpush1.msra.mxu0 0.0
      %321 = vmatprep.subr.mxu0 0.0
      %322 = vmatpush1.msra.mxu0 0.0
      %323 = vmatprep.subr.mxu0 0.0
      %324 = vmatpush1.msra.mxu0 0.0
      %325 = vmatprep.subr.mxu0 0.0
      %326 = vmatpush1.msra.mxu0 0.0
      %327 = vmatprep.subr.mxu0 0.0
      %328 = vmatpush1.msra.mxu0 0.0
      %329 = vmatprep.mubr.f32.mxu0 0.0
      %330 = vmatmul.mubr.f32.gmra.mrb[0].mxu0 %v263
      %v331 = vpop.f32.mrb[0].mxu0
      %v332 = vadd.f32 0.0, %v331
      %v333 = vpop.f32.mrb[0].mxu0
      %334 = vdwg.mxu0
      %v335 = vadd.f32 %v253, %v332
      %v336 = vld [vmem:[%s3] sm:$0x1]
      %v338 = vlaneseq
      %v339 = vshrl.u32 %v338, 7
      %v340 = vsub.s32 0, %v339
      %v341 = vrot.slane %v336, %v340
      %v343 = vadd.f32 %v335, %v341
      %v344 = vtanh.pop %v343
      %v345 = vld [vmem:[%s4] sm:$0xff]
      %v346 = vld [vmem:[%s4 + $0x8] sm:$0xff]
      %v347 = vld [vmem:[%s4 + $0x10] sm:$0xff]
      %v348 = vld [vmem:[%s4 + $0x18] sm:$0xff]
      %v349 = vld [vmem:[%s5] sm:$0x1]
      %v351 = vlaneseq
      %v352 = vshrl.u32 %v351, 7
      %v353 = vsub.s32 0, %v352
      %v354 = vrot.slane %v349, %v353
      %v357 = vsel %vm43, %v344, 0
      %359 = vmatprep.subr.mxu0 0.0
      %360 = vmatpush1.msra.mxu0 %v345
      %361 = vmatprep.subr.mxu0 0.0
      %362 = vmatpush1.msra.mxu0 %v346
      %363 = vmatprep.subr.mxu0 0.0
      %364 = vmatpush1.msra.mxu0 %v347
      %365 = vmatprep.subr.mxu0 0.0
      %366 = vmatpush1.msra.mxu0 %v348
      %367 = vmatprep.subr.mxu0 0.0
      %368 = vmatpush1.msra.mxu0 0.0
      %369 = vmatprep.subr.mxu0 0.0
      %370 = vmatpush1.msra.mxu0 0.0
      %371 = vmatprep.subr.mxu0 0.0
      %372 = vmatpush1.msra.mxu0 0.0
      %373 = vmatprep.subr.mxu0 0.0
      %374 = vmatpush1.msra.mxu0 0.0
      %375 = vmatprep.subr.mxu0 0.0
      %376 = vmatpush1.msra.mxu0 0.0
      %377 = vmatprep.subr.mxu0 0.0
      %378 = vmatpush1.msra.mxu0 0.0
      %379 = vmatprep.subr.mxu0 0.0
      %380 = vmatpush1.msra.mxu0 0.0
      %381 = vmatprep.subr.mxu0 0.0
      %382 = vmatpush1.msra.mxu0 0.0
      %383 = vmatprep.subr.mxu0 0.0
      %384 = vmatpush1.msra.mxu0 0.0
      %385 = vmatprep.subr.mxu0 0.0
      %386 = vmatpush1.msra.mxu0 0.0
      %387 = vmatprep.subr.mxu0 0.0
      %388 = vmatpush1.msra.mxu0 0.0
      %389 = vmatprep.subr.mxu0 0.0
      %390 = vmatpush1.msra.mxu0 0.0
      %391 = vmatprep.subr.mxu0 0.0
      %392 = vmatpush1.msra.mxu0 0.0
      %393 = vmatprep.subr.mxu0 0.0
      %394 = vmatpush1.msra.mxu0 0.0
      %395 = vmatprep.subr.mxu0 0.0
      %396 = vmatpush1.msra.mxu0 0.0
      %397 = vmatprep.subr.mxu0 0.0
      %398 = vmatpush1.msra.mxu0 0.0
      %399 = vmatprep.subr.mxu0 0.0
      %400 = vmatpush1.msra.mxu0 0.0
      %401 = vmatprep.subr.mxu0 0.0
      %402 = vmatpush1.msra.mxu0 0.0
      %403 = vmatprep.subr.mxu0 0.0
      %404 = vmatpush1.msra.mxu0 0.0
      %405 = vmatprep.subr.mxu0 0.0
      %406 = vmatpush1.msra.mxu0 0.0
      %407 = vmatprep.subr.mxu0 0.0
      %408 = vmatpush1.msra.mxu0 0.0
      %409 = vmatprep.subr.mxu0 0.0
      %410 = vmatpush1.msra.mxu0 0.0
      %411 = vmatprep.subr.mxu0 0.0
      %412 = vmatpush1.msra.mxu0 0.0
      %413 = vmatprep.subr.mxu0 0.0
      %414 = vmatpush1.msra.mxu0 0.0
      %415 = vmatprep.subr.mxu0 0.0
      %416 = vmatpush1.msra.mxu0 0.0
      %417 = vmatprep.subr.mxu0 0.0
      %418 = vmatpush1.msra.mxu0 0.0
      %419 = vmatprep.subr.mxu0 0.0
      %420 = vmatpush1.msra.mxu0 0.0
      %421 = vmatprep.subr.mxu0 0.0
      %422 = vmatpush1.msra.mxu0 0.0
      %423 = vmatprep.mubr.f32.mxu0 0.0
      %424 = vmatmul.mubr.f32.gmra.mrb[0].mxu0 %v357
      %v425 = vpop.f32.mrb[0].mxu0
      %v426 = vadd.f32 %v354, %v425
      %v427 = vpop.f32.mrb[0].mxu0
      %428 = vdwg.mxu0
      %vm429 = vcmask 9216
      %430 = vst.msk [vmem:[#allocation4] sm:$0x3] %vm429, %v426
    $region33: #{tpu_custom_call.1} parent=1 // pred_fallthru
      _
    // Predicated region
    $region34: #{tpu_custom_call.1} parent=1 // pred_check
      _
    $region35: #{tpu_custom_call.1} parent=1 // pred_check_branch
      %432 = sbr.rel (0) target = $region37
    $region36: #{tpu_custom_call.1} parent=1 // pred_region
      %s434 = ssub.s32 32, 32
      %435 = vsyncadd [#allocation5], %s434
      %s437 = sshll.u32 [#allocation4], 4
      %s438 = int_to_ptr.vmem [resolvable:$true] %s437
      %440 = dma.vmem_to_hbm [thread:$0]  %s438, 32, %s6, [#allocation5]
    $region37: #{tpu_custom_call.1} parent=1 // pred_fallthru
      _
    // Predicated region
    $region38: #{tpu_custom_call.1} parent=1 // pred_check
      _
    $region39: #{tpu_custom_call.1} parent=1 // pred_check_branch
      %442 = sbr.rel (0) target = $region41
    $region40: #{tpu_custom_call.1} parent=1 // pred_region
      %443 = dma.done [#allocation5], 32
    $region41: #{tpu_custom_call.1} parent=1 // pred_fallthru
      _
    %444 = vsyncpa [#allocation5], 1

</llo_original>
